<compile_context>
chip_gen: v5e
topology: v5e:2x2
jax: 0.10.0
libtpu: 0.0.40
codegen_flags: <defaults>
</compile_context>

<pallas_src>
import math

import jax
import jax.numpy as jnp
from jax.experimental import pallas as pl
from jax.experimental.pallas import tpu as pltpu


def _dma_copy_kernel(x_hbm, o_hbm, sem):
    # Single direct HBM->HBM DMA of the whole (already squeezed-shape) array.
    cp = pltpu.make_async_copy(x_hbm, o_hbm, sem)
    cp.start()
    cp.wait()


def squeeze_pallas(x: jax.Array, *, force_kernel: bool = False) -> jax.Array:
    """Reproduces torch.Tensor.squeeze(): drops every size-1 dimension.

    Default path is metadata-only (jnp.reshape) — zero HBM traffic.
    force_kernel=True materializes a fresh buffer via a direct HBM->HBM DMA.
    """
    out_shape = tuple(d for d in x.shape if d != 1)
    total = math.prod(x.shape) if x.shape else 1
    itemsize = jnp.dtype(x.dtype).itemsize
    nbytes = total * itemsize

    # Fast path (and the only sensible path for a squeeze): metadata reshape.
    if not force_kernel or total == 0 or len(out_shape) == 0:
        return jnp.reshape(x, out_shape)

    # Explicitly requested materialized copy: one HBM->HBM DMA, no VMEM
    # staging, no grid, no tiling constraints.
    x_sq = jnp.reshape(x, out_shape)  # metadata-only view at the target shape
    return pl.pallas_call(
        _dma_copy_kernel,
        out_shape=jax.ShapeDtypeStruct(out_shape, x.dtype),
        in_specs=[pl.BlockSpec(memory_space=pl.ANY)],
        out_specs=pl.BlockSpec(memory_space=pl.ANY),
        scratch_shapes=[pltpu.SemaphoreType.DMA(())],
        cost_estimate=pl.CostEstimate(
            flops=0, transcendentals=0, bytes_accessed=2 * nbytes
        ),
    )(x_sq)


if __name__ == "__main__":
    key = jax.random.PRNGKey(0)

    # Small NCHW input with a size-1 channel dim: metadata-only fast path.
    x_small = jax.random.normal(key, (2, 1, 16, 16), dtype=jnp.float32)
    y_small = squeeze_pallas(x_small)
    jax.block_until_ready(y_small)
    assert y_small.shape == (2, 16, 16), y_small.shape
    assert y_small.dtype == x_small.dtype
    assert bool(jnp.array_equal(y_small, jnp.squeeze(x_small)))

    # Exercise the explicit DMA-copy path once (materialized output).
    x_big = jax.random.normal(jax.random.PRNGKey(0), (8, 1, 64, 64),
                              dtype=jnp.float32)
    y_big = squeeze_pallas(x_big, force_kernel=True)
    jax.block_until_ready(y_big)
    assert y_big.shape == (8, 64, 64), y_big.shape
    assert y_big.dtype == x_big.dtype
    assert bool(jnp.array_equal(y_big, jnp.squeeze(x_big)))

    print("KERNEL_OK")
</pallas_src>

<mosaic_0001>
module attributes {stable_mosaic.version = 11 : i64} {
  func.func @_dma_copy_kernel(%arg0: memref<8x64x64xf32, #tpu.memory_space<any>>, %arg1: memref<8x64x64xf32, #tpu.memory_space<any>>, %arg2: memref<!tpu.dma_semaphore, #tpu.memory_space<semaphore_mem>>) attributes {dimension_semantics = [], scalar_prefetch = 0 : i64, scratch_operands = 1 : i64, tpu.core_type = #tpu.core_type<tc>} {
    tpu.enqueue_dma source(%arg0 : memref<8x64x64xf32, #tpu.memory_space<any>>) target(%arg1 : memref<8x64x64xf32, #tpu.memory_space<any>>) target_semaphore(%arg2 : memref<!tpu.dma_semaphore, #tpu.memory_space<semaphore_mem>>)
    tpu.wait_dma2 semaphore(%arg2 : memref<!tpu.dma_semaphore, #tpu.memory_space<semaphore_mem>>) src(%arg0 : memref<8x64x64xf32, #tpu.memory_space<any>>) dst(%arg1 : memref<8x64x64xf32, #tpu.memory_space<any>>)
    return
  }
}

</mosaic_0001>

<llo_original>
// kernel: tpu_custom_call.1
$region0: #{tpu_custom_call.1}
  #allocation0 [shape = 'u32[]', space=smem, size = 0x4, offset = 0x4, fixed_abs, tag = 'smem constant byte address 0x4 - core index']
  #allocation1 [shape = 'u32[72,128]{1,0:T(1,128)}', space=vmem, size = 0x9000, scoped, tag = 'internal scratch']
  #allocation2 [shape = 's32[1]{0}', space=sflag, size = 0x4, scoped, tag = 'scratch operand']
  #allocation3 [shape = 's32[]', space=sflag, size = 0x4, offset = 0, fixed_abs, tag = 'sflag constant byte address 0x0 - dummy sync flag']
  #allocation4 [shape = 'u32[0]{0}', space=smem, size = 0, offset = 0, fixed_abs, tag = 'smem constant byte address 0x0 - null']
  %s0 = inlined_call_operand.hbm [shape: f32[8,64,64], index: 0, kind: input, shape index: {}]
  %s1 = inlined_call_operand.hbm [shape: f32[8,64,64], index: 1, kind: output, shape index: {}]
  %s2 = sld [smem:[#allocation0]]
  $region2: #{tpu_custom_call.1} parent=0
    _
  %s4 = ssub.s32 1, %s2
  %s5 = scalar_select 0, %s4, %s2
  %s7 = sshll.u32 1, 14
  %s8 = sxor.u32 4294967295, %s7
  %s10 = sshll.u32 %s0, 4
  %s11 = int_to_ptr.hbm [resolvable:$true] %s10
  %s12 = sshll.u32 %s1, 4
  %s13 = int_to_ptr.hbm [resolvable:$true] %s12
  %16 = dma.general %s11, 8192, %s13, [#allocation2], [#allocation3], [#allocation4], 0, 0
  %s17 = smul.u32 8, 64
  %s18 = smul.u32 %s17, 1
  %s19 = sshll.u32 %s18, 4
  %20 = dma.done [#allocation2], %s19
  %21 = vsyncmov [#allocation2]
  %s22 = vpop.sfrf %21
  %p23 = scmp.eq.s32.totalorder %s22, 0
  %p24 = pneg %p23
  %26 = shalt.err (%p24)

</llo_original>
